<compile_context>
chip_gen: v7x
topology: tpu7x:2x2x1
jax: 0.10.0
libtpu: 0.0.40
codegen_flags: <defaults>
</compile_context>

<pallas_src>
import functools

import jax
import jax.numpy as jnp
from jax.experimental import pallas as pl
from jax.experimental.pallas import tpu as pltpu


def _round_up(x: int, m: int) -> int:
    return (x + m - 1) // m * m


def _make_mapping_kernel(num_body, num_heads, out_dim, num_y, compute_dtype):
    """refs = [z, y, W_body*num_body, b_body*num_body, W_heads, b_heads, out]."""
    head_width = num_heads * out_dim

    def kernel(*refs):
        z_ref, y_ref = refs[0], refs[1]
        w_refs = refs[2:2 + num_body]
        b_refs = refs[2 + num_body:2 + 2 * num_body]
        wh_ref = refs[2 + 2 * num_body]
        bh_ref = refs[3 + 2 * num_body]
        out_ref = refs[4 + 2 * num_body]

        # Body: Linear -> ReLU chain.  MXU accumulates in f32; bias add / ReLU
        # stay f32 (v5e has no bf16 VPU path); cast back to the compute dtype
        # only for the next matmul.  All widths are 128-lane padded at repack
        # time, so these are full-vreg ops.
        x = z_ref[...].astype(compute_dtype)
        for l in range(num_body):
            h = jnp.dot(x, w_refs[l][...],
                        preferred_element_type=jnp.float32) + b_refs[l][...]
            x = jnp.maximum(h, 0.0).astype(compute_dtype)

        # All heads fused into one matmul: (TB, hidden_pad) @ (hidden_pad, HWp).
        heads = jnp.dot(x, wh_ref[...],
                        preferred_element_type=jnp.float32) + bh_ref[...]
        heads = heads[:, :head_width]            # drop lane padding (if any)

        # Per-sample head gather.  Masked accumulation with a balanced add
        # tree (no serial select chain); exactly one term per row is non-zero.
        # Out-of-range y rows gather to zeros (documented contract).
        y_idx = y_ref[...]                       # (TB, K) int32
        cols = []
        for k in range(num_y):
            yk = y_idx[:, k:k + 1]               # (TB, 1)
            terms = [
                jnp.where(yk == hi,
                          heads[:, hi * out_dim:(hi + 1) * out_dim], 0.0)
                for hi in range(num_heads)
            ]
            while len(terms) > 1:                # balanced tree -> ILP on VPU
                nxt = [terms[i] + terms[i + 1] for i in range(0, len(terms) - 1, 2)]
                if len(terms) % 2:
                    nxt.append(terms[-1])
                terms = nxt
            cols.append(terms[0])
        # Single coalesced store per tile instead of K narrow masked stores.
        out_ref[...] = jnp.concatenate(cols, axis=1).astype(out_ref.dtype)

    return kernel


def prepare_mapping_params(body_params, head_params,
                           compute_dtype=jnp.bfloat16, lane_pad=128):
    """One-time repack of PyTorch-layout params (do NOT call per forward).

    body_params: list of (W, b), W: (out, in), b: (out,)
    head_params: list of (W, b), W: (out_dim, hidden), b: (out_dim,)

    Weights are transposed to (in, out), all heads fused into one matrix, and
    hidden / fused-head widths zero-padded to multiples of `lane_pad` so every
    matmul N dim / bias add / ReLU works on full 128-lane vregs.  latent_dim
    (the z feature dim) is intentionally NOT padded.  Weights are stored in
    `compute_dtype` (bf16 = MXU-native; fp8 is an option for head_w on v7x);
    biases stay f32.

    Returns (body_ws, body_bs, head_w, head_b, num_heads, out_dim).
    """
    out_dims = {int(jnp.asarray(w).shape[0]) for (w, _) in head_params}
    assert len(out_dims) == 1, "all heads must share the same out_dim"
    out_dim = out_dims.pop()
    num_heads = len(head_params)

    def pad_cols(a):
        p = -a.shape[1] % lane_pad
        return a if p == 0 else jnp.pad(a, ((0, 0), (0, p)))

    def pad_rows(a):
        p = -a.shape[0] % lane_pad
        return a if p == 0 else jnp.pad(a, ((0, p), (0, 0)))

    body_ws, body_bs = [], []
    for i, (w, b) in enumerate(body_params):
        wt = jnp.asarray(w, jnp.float32).T          # (in, out)
        if i > 0:                                    # match previous padded width
            wt = pad_rows(wt)
        wt = pad_cols(wt)
        body_ws.append(wt.astype(compute_dtype))
        body_bs.append(pad_cols(jnp.asarray(b, jnp.float32).reshape(1, -1)))

    head_w = jnp.concatenate(
        [jnp.asarray(w, jnp.float32).T for (w, _) in head_params], axis=1)
    head_w = pad_cols(pad_rows(head_w)).astype(compute_dtype)
    head_b = pad_cols(jnp.concatenate(
        [jnp.asarray(b, jnp.float32) for (_, b) in head_params]).reshape(1, -1))

    return tuple(body_ws), tuple(body_bs), head_w, head_b, num_heads, out_dim


@functools.partial(jax.jit, static_argnames=("num_heads", "out_dim", "out_dtype"))
def mapping_forward(z, y, body_ws, body_bs, head_w, head_b,
                    *, num_heads, out_dim, out_dtype=jnp.float32):
    """Pallas-backed forward of `Mapping`.

    z: (B, latent_dim) f32, y: (B, K) integer head indices.
    Returns (B*K, out_dim) in `out_dtype` (f32 by default; pass bf16 to halve
    output HBM traffic if downstream tolerates it).

    Contract: out-of-range y indices yield all-zero output rows (PyTorch
    indexing would raise); they are not range-checked in the kernel.
    """
    B, latent = z.shape
    K = y.shape[1]
    num_body = len(body_ws)
    compute_dtype = body_ws[0].dtype
    hidden_pad = max(int(w.shape[1]) for w in body_ws)
    head_width_pad = int(head_w.shape[1])
    out_w = K * out_dim

    # ---- batch tile from a VMEM budget (no hard cap, no batch padding) -----
    # Per-row bytes: double-buffered z/y/out tiles + rough f32 temporaries for
    # body activations and the fused head result.
    row_bytes = (2 * 4 * (latent + K + out_w)
                 + 4 * (2 * hidden_pad + head_width_pad + out_w))
    tile_budget = 8 << 20
    if B <= 8:
        tb = B
    else:
        tb = max(8, min(1024, tile_budget // max(row_bytes, 1)))
        tb = tb // 8 * 8
        # Cap at ceil(B/2) so the grid has >= 2 steps -> both v7x TensorCores.
        tb = max(8, min(tb, _round_up((B + 1) // 2, 8)))
    grid = (pl.cdiv(B, tb),)   # ragged last block handled by Pallas

    # ---- explicit VMEM budget ----------------------------------------------
    def nbytes(a):
        return a.size * a.dtype.itemsize

    weight_bytes = (sum(nbytes(w) for w in body_ws)
                    + sum(nbytes(b) for b in body_bs)
                    + nbytes(head_w) + nbytes(head_b))
    tile_bytes = 2 * tb * 4 * (latent + K + out_w)
    temp_bytes = tb * 4 * (2 * hidden_pad + 2 * head_width_pad + 2 * out_w)
    # 2x weights: constant-index inputs are DMA'd once, but the default
    # pipeline still reserves two buffers for them (pl.Buffered(1) on the
    # resident specs could halve this for very large fused head matrices).
    vmem_limit = 2 * weight_bytes + tile_bytes + temp_bytes + (4 << 20)
    vmem_limit = int(min(64 << 20, max(16 << 20, vmem_limit)))

    kernel = _make_mapping_kernel(num_body, num_heads, out_dim, K, compute_dtype)

    def tiled(ncols):
        return pl.BlockSpec((tb, ncols), lambda i: (i, 0))

    def resident(arr):
        # Same block every grid step -> fetched once, stays VMEM-resident.
        return pl.BlockSpec(arr.shape, lambda i: (0, 0))

    in_specs = [tiled(latent), tiled(K)]
    in_specs += [resident(w) for w in body_ws]
    in_specs += [resident(b) for b in body_bs]
    in_specs += [resident(head_w), resident(head_b)]

    out = pl.pallas_call(
        kernel,
        out_shape=jax.ShapeDtypeStruct((B, out_w), out_dtype),
        grid_spec=pltpu.PrefetchScalarGridSpec(
            num_scalar_prefetch=0,
            grid=grid,
            in_specs=in_specs,
            out_specs=pl.BlockSpec((tb, out_w), lambda i: (i, 0)),
        ),
        compiler_params=pltpu.CompilerParams(
            dimension_semantics=("parallel",),   # batch tiles across v7x's 2 TCs
            vmem_limit_bytes=vmem_limit,
        ),
    )(z, y.astype(jnp.int32), *body_ws, *body_bs, head_w, head_b)

    # Contiguous (zero-copy) reshape: row i*K + k  <-  sample i, head y[i, k].
    return out.reshape(B * K, out_dim)


def _init_linear(key, in_features, out_features):
    """Deterministic init matching PyTorch Linear's default uniform bounds."""
    kw, kb = jax.random.split(key)
    bound = 1.0 / jnp.sqrt(jnp.float32(in_features))
    w = jax.random.uniform(kw, (out_features, in_features), jnp.float32, -bound, bound)
    b = jax.random.uniform(kb, (out_features,), jnp.float32, -bound, bound)
    return w, b


def _reference_forward(z, y, body_params, head_params, compute_dtype):
    """Pure-JAX reference emulating the kernel's dtype strategy (compute_dtype
    matmul inputs, f32 accumulation / bias / ReLU)."""
    x = z.astype(compute_dtype)
    for (w, b) in body_params:
        h = jnp.dot(x, jnp.asarray(w).T.astype(compute_dtype),
                    preferred_element_type=jnp.float32) + b
        x = jnp.maximum(h, 0.0).astype(compute_dtype)
    heads = [jnp.dot(x, jnp.asarray(w).T.astype(compute_dtype),
                     preferred_element_type=jnp.float32) + b
             for (w, b) in head_params]
    style = jnp.stack(heads, axis=1)                          # (B, H, out_dim)
    gathered = style[jnp.arange(z.shape[0])[:, None], y, :]   # (B, K, out_dim)
    return gathered.reshape(-1, head_params[0][0].shape[0])


if __name__ == "__main__":
    # Small shapes consistent with the module.
    B = 2
    latent_dim = 8
    hidden_dim = 32
    out_dim = 16
    num_shared_layers = 2
    num_heads = 3
    K = 2  # indices per sample in y

    root = jax.random.PRNGKey(0)
    keys = jax.random.split(root, 2 + (1 + num_shared_layers) + num_heads)

    z = jax.random.normal(keys[0], (B, latent_dim), jnp.float32)
    y = jax.random.randint(keys[1], (B, K), 0, num_heads, jnp.int32)

    body_params = []
    kidx = 2
    body_params.append(_init_linear(keys[kidx], latent_dim, hidden_dim)); kidx += 1
    for _ in range(num_shared_layers):
        body_params.append(_init_linear(keys[kidx], hidden_dim, hidden_dim)); kidx += 1
    head_params = []
    for _ in range(num_heads):
        head_params.append(_init_linear(keys[kidx], hidden_dim, out_dim)); kidx += 1

    # One-time parameter repack (transposes / head fusion / lane padding are
    # hoisted out of the per-call path).  bf16 weights -> MXU-native matmuls.
    body_ws, body_bs, head_w, head_b, nh, od = prepare_mapping_params(
        body_params, head_params, compute_dtype=jnp.bfloat16)

    out = mapping_forward(z, y, body_ws, body_bs, head_w, head_b,
                          num_heads=nh, out_dim=od)
    out = jax.block_until_ready(out)

    # Reference that mirrors the kernel's dtype strategy; remaining difference
    # is only MXU vs XLA rounding.
    ref = _reference_forward(z, y, body_params, head_params, jnp.bfloat16)

    assert out.shape == (B * K, out_dim), out.shape
    assert jnp.allclose(out, ref, atol=2e-2, rtol=2e-2), "mismatch vs reference"

    print("KERNEL_OK")
</pallas_src>

<mosaic_0001>
module attributes {stable_mosaic.version = 11 : i64} {
  func.func @kernel(%arg0: i32, %arg1: memref<2x8xf32, #tpu.memory_space<vmem>>, %arg2: memref<2x2xi32, #tpu.memory_space<vmem>>, %arg3: memref<8x128xbf16, #tpu.memory_space<vmem>>, %arg4: memref<128x128xbf16, #tpu.memory_space<vmem>>, %arg5: memref<128x128xbf16, #tpu.memory_space<vmem>>, %arg6: memref<1x128xf32, #tpu.memory_space<vmem>>, %arg7: memref<1x128xf32, #tpu.memory_space<vmem>>, %arg8: memref<1x128xf32, #tpu.memory_space<vmem>>, %arg9: memref<128x128xbf16, #tpu.memory_space<vmem>>, %arg10: memref<1x128xf32, #tpu.memory_space<vmem>>, %arg11: memref<2x32xf32, #tpu.memory_space<vmem>>) attributes {dimension_semantics = [#tpu.dimension_semantics<parallel>], iteration_bounds = array<i64: 1>, scalar_prefetch = 0 : i64, scratch_operands = 0 : i64, tpu.core_type = #tpu.core_type<tc>, window_params = [{transform_indices = @transform_0, window_bounds = array<i64: 2, 8>}, {transform_indices = @transform_1, window_bounds = array<i64: 2, 2>}, {pipeline_mode = #tpu.pipeline_mode<synchronous>, transform_indices = @transform_2, window_bounds = array<i64: 8, 128>}, {pipeline_mode = #tpu.pipeline_mode<synchronous>, transform_indices = @transform_3, window_bounds = array<i64: 128, 128>}, {pipeline_mode = #tpu.pipeline_mode<synchronous>, transform_indices = @transform_4, window_bounds = array<i64: 128, 128>}, {pipeline_mode = #tpu.pipeline_mode<synchronous>, transform_indices = @transform_5, window_bounds = array<i64: 1, 128>}, {pipeline_mode = #tpu.pipeline_mode<synchronous>, transform_indices = @transform_6, window_bounds = array<i64: 1, 128>}, {pipeline_mode = #tpu.pipeline_mode<synchronous>, transform_indices = @transform_7, window_bounds = array<i64: 1, 128>}, {pipeline_mode = #tpu.pipeline_mode<synchronous>, transform_indices = @transform_8, window_bounds = array<i64: 128, 128>}, {pipeline_mode = #tpu.pipeline_mode<synchronous>, transform_indices = @transform_9, window_bounds = array<i64: 1, 128>}, {transform_indices = @transform_10, window_bounds = array<i64: 2, 32>}]} {
    %c0 = arith.constant 0 : index
    %c0_0 = arith.constant 0 : index
    %0 = vector.load %arg1[%c0, %c0_0] : memref<2x8xf32, #tpu.memory_space<vmem>>, vector<2x8xf32>
    %1 = arith.truncf %0 : vector<2x8xf32> to vector<2x8xbf16>
    %c0_1 = arith.constant 0 : index
    %c0_2 = arith.constant 0 : index
    %2 = vector.load %arg3[%c0_1, %c0_2] : memref<8x128xbf16, #tpu.memory_space<vmem>>, vector<8x128xbf16>
    %cst = arith.constant dense<0.000000e+00> : vector<2x128xf32>
    %3 = tpu.matmul %1, %2, %cst {dimension_numbers = #tpu.dot_dimension_numbers<[1], [0], [0], [1], [0, 0, 1, 1], [], []>} : vector<2x8xbf16>, vector<8x128xbf16>, vector<2x128xf32> -> vector<2x128xf32>
    %c0_3 = arith.constant 0 : index
    %c0_4 = arith.constant 0 : index
    %4 = vector.load %arg6[%c0_3, %c0_4] : memref<1x128xf32, #tpu.memory_space<vmem>>, vector<1x128xf32>
    %5 = vector.broadcast %4 : vector<1x128xf32> to vector<2x128xf32>
    %6 = arith.addf %3, %5 : vector<2x128xf32>
    %cst_5 = arith.constant 0.000000e+00 : f32
    %7 = vector.broadcast %cst_5 : f32 to vector<2x128xf32>
    %8 = arith.maximumf %6, %7 : vector<2x128xf32>
    %9 = arith.truncf %8 : vector<2x128xf32> to vector<2x128xbf16>
    %c0_6 = arith.constant 0 : index
    %c0_7 = arith.constant 0 : index
    %10 = vector.load %arg4[%c0_6, %c0_7] : memref<128x128xbf16, #tpu.memory_space<vmem>>, vector<128x128xbf16>
    %cst_8 = arith.constant dense<0.000000e+00> : vector<2x128xf32>
    %11 = tpu.matmul %9, %10, %cst_8 {dimension_numbers = #tpu.dot_dimension_numbers<[1], [0], [0], [1], [0, 0, 1, 1], [], []>} : vector<2x128xbf16>, vector<128x128xbf16>, vector<2x128xf32> -> vector<2x128xf32>
    %c0_9 = arith.constant 0 : index
    %c0_10 = arith.constant 0 : index
    %12 = vector.load %arg7[%c0_9, %c0_10] : memref<1x128xf32, #tpu.memory_space<vmem>>, vector<1x128xf32>
    %13 = vector.broadcast %12 : vector<1x128xf32> to vector<2x128xf32>
    %14 = arith.addf %11, %13 : vector<2x128xf32>
    %cst_11 = arith.constant 0.000000e+00 : f32
    %15 = vector.broadcast %cst_11 : f32 to vector<2x128xf32>
    %16 = arith.maximumf %14, %15 : vector<2x128xf32>
    %17 = arith.truncf %16 : vector<2x128xf32> to vector<2x128xbf16>
    %c0_12 = arith.constant 0 : index
    %c0_13 = arith.constant 0 : index
    %18 = vector.load %arg5[%c0_12, %c0_13] : memref<128x128xbf16, #tpu.memory_space<vmem>>, vector<128x128xbf16>
    %cst_14 = arith.constant dense<0.000000e+00> : vector<2x128xf32>
    %19 = tpu.matmul %17, %18, %cst_14 {dimension_numbers = #tpu.dot_dimension_numbers<[1], [0], [0], [1], [0, 0, 1, 1], [], []>} : vector<2x128xbf16>, vector<128x128xbf16>, vector<2x128xf32> -> vector<2x128xf32>
    %c0_15 = arith.constant 0 : index
    %c0_16 = arith.constant 0 : index
    %20 = vector.load %arg8[%c0_15, %c0_16] : memref<1x128xf32, #tpu.memory_space<vmem>>, vector<1x128xf32>
    %21 = vector.broadcast %20 : vector<1x128xf32> to vector<2x128xf32>
    %22 = arith.addf %19, %21 : vector<2x128xf32>
    %cst_17 = arith.constant 0.000000e+00 : f32
    %23 = vector.broadcast %cst_17 : f32 to vector<2x128xf32>
    %24 = arith.maximumf %22, %23 : vector<2x128xf32>
    %25 = arith.truncf %24 : vector<2x128xf32> to vector<2x128xbf16>
    %c0_18 = arith.constant 0 : index
    %c0_19 = arith.constant 0 : index
    %26 = vector.load %arg9[%c0_18, %c0_19] : memref<128x128xbf16, #tpu.memory_space<vmem>>, vector<128x128xbf16>
    %cst_20 = arith.constant dense<0.000000e+00> : vector<2x128xf32>
    %27 = tpu.matmul %25, %26, %cst_20 {dimension_numbers = #tpu.dot_dimension_numbers<[1], [0], [0], [1], [0, 0, 1, 1], [], []>} : vector<2x128xbf16>, vector<128x128xbf16>, vector<2x128xf32> -> vector<2x128xf32>
    %c0_21 = arith.constant 0 : index
    %c0_22 = arith.constant 0 : index
    %28 = vector.load %arg10[%c0_21, %c0_22] : memref<1x128xf32, #tpu.memory_space<vmem>>, vector<1x128xf32>
    %29 = vector.broadcast %28 : vector<1x128xf32> to vector<2x128xf32>
    %30 = arith.addf %27, %29 : vector<2x128xf32>
    %31 = vector.extract_strided_slice %30 {offsets = [0, 0], sizes = [2, 48], strides = [1, 1]} : vector<2x128xf32> to vector<2x48xf32>
    %c0_23 = arith.constant 0 : index
    %c0_24 = arith.constant 0 : index
    %32 = vector.load %arg2[%c0_23, %c0_24] : memref<2x2xi32, #tpu.memory_space<vmem>>, vector<2x2xi32>
    %33 = vector.extract_strided_slice %32 {offsets = [0, 0], sizes = [2, 1], strides = [1, 1]} : vector<2x2xi32> to vector<2x1xi32>
    %c0_i32 = arith.constant 0 : i32
    %34 = vector.broadcast %c0_i32 : i32 to vector<2x1xi32>
    %35 = arith.cmpi eq, %33, %34 : vector<2x1xi32>
    %36 = vector.extract_strided_slice %31 {offsets = [0, 0], sizes = [2, 16], strides = [1, 1]} : vector<2x48xf32> to vector<2x16xf32>
    %cst_25 = arith.constant 0.000000e+00 : f32
    %37 = vector.shape_cast %35 : vector<2x1xi1> to vector<2x1xi1>
    %38 = vector.broadcast %37 : vector<2x1xi1> to vector<2x16xi1>
    %39 = vector.broadcast %cst_25 : f32 to vector<2x16xf32>
    %40 = arith.select %38, %36, %39 : vector<2x16xi1>, vector<2x16xf32>
    %c1_i32 = arith.constant 1 : i32
    %41 = vector.broadcast %c1_i32 : i32 to vector<2x1xi32>
    %42 = arith.cmpi eq, %33, %41 : vector<2x1xi32>
    %43 = vector.extract_strided_slice %31 {offsets = [0, 16], sizes = [2, 16], strides = [1, 1]} : vector<2x48xf32> to vector<2x16xf32>
    %cst_26 = arith.constant 0.000000e+00 : f32
    %44 = vector.shape_cast %42 : vector<2x1xi1> to vector<2x1xi1>
    %45 = vector.broadcast %44 : vector<2x1xi1> to vector<2x16xi1>
    %46 = vector.broadcast %cst_26 : f32 to vector<2x16xf32>
    %47 = arith.select %45, %43, %46 : vector<2x16xi1>, vector<2x16xf32>
    %c2_i32 = arith.constant 2 : i32
    %48 = vector.broadcast %c2_i32 : i32 to vector<2x1xi32>
    %49 = arith.cmpi eq, %33, %48 : vector<2x1xi32>
    %50 = vector.extract_strided_slice %31 {offsets = [0, 32], sizes = [2, 16], strides = [1, 1]} : vector<2x48xf32> to vector<2x16xf32>
    %cst_27 = arith.constant 0.000000e+00 : f32
    %51 = vector.shape_cast %49 : vector<2x1xi1> to vector<2x1xi1>
    %52 = vector.broadcast %51 : vector<2x1xi1> to vector<2x16xi1>
    %53 = vector.broadcast %cst_27 : f32 to vector<2x16xf32>
    %54 = arith.select %52, %50, %53 : vector<2x16xi1>, vector<2x16xf32>
    %55 = arith.addf %40, %47 : vector<2x16xf32>
    %56 = arith.addf %55, %54 : vector<2x16xf32>
    %57 = vector.extract_strided_slice %32 {offsets = [0, 1], sizes = [2, 1], strides = [1, 1]} : vector<2x2xi32> to vector<2x1xi32>
    %c0_i32_28 = arith.constant 0 : i32
    %58 = vector.broadcast %c0_i32_28 : i32 to vector<2x1xi32>
    %59 = arith.cmpi eq, %57, %58 : vector<2x1xi32>
    %60 = vector.extract_strided_slice %31 {offsets = [0, 0], sizes = [2, 16], strides = [1, 1]} : vector<2x48xf32> to vector<2x16xf32>
    %cst_29 = arith.constant 0.000000e+00 : f32
    %61 = vector.shape_cast %59 : vector<2x1xi1> to vector<2x1xi1>
    %62 = vector.broadcast %61 : vector<2x1xi1> to vector<2x16xi1>
    %63 = vector.broadcast %cst_29 : f32 to vector<2x16xf32>
    %64 = arith.select %62, %60, %63 : vector<2x16xi1>, vector<2x16xf32>
    %c1_i32_30 = arith.constant 1 : i32
    %65 = vector.broadcast %c1_i32_30 : i32 to vector<2x1xi32>
    %66 = arith.cmpi eq, %57, %65 : vector<2x1xi32>
    %67 = vector.extract_strided_slice %31 {offsets = [0, 16], sizes = [2, 16], strides = [1, 1]} : vector<2x48xf32> to vector<2x16xf32>
    %cst_31 = arith.constant 0.000000e+00 : f32
    %68 = vector.shape_cast %66 : vector<2x1xi1> to vector<2x1xi1>
    %69 = vector.broadcast %68 : vector<2x1xi1> to vector<2x16xi1>
    %70 = vector.broadcast %cst_31 : f32 to vector<2x16xf32>
    %71 = arith.select %69, %67, %70 : vector<2x16xi1>, vector<2x16xf32>
    %c2_i32_32 = arith.constant 2 : i32
    %72 = vector.broadcast %c2_i32_32 : i32 to vector<2x1xi32>
    %73 = arith.cmpi eq, %57, %72 : vector<2x1xi32>
    %74 = vector.extract_strided_slice %31 {offsets = [0, 32], sizes = [2, 16], strides = [1, 1]} : vector<2x48xf32> to vector<2x16xf32>
    %cst_33 = arith.constant 0.000000e+00 : f32
    %75 = vector.shape_cast %73 : vector<2x1xi1> to vector<2x1xi1>
    %76 = vector.broadcast %75 : vector<2x1xi1> to vector<2x16xi1>
    %77 = vector.broadcast %cst_33 : f32 to vector<2x16xf32>
    %78 = arith.select %76, %74, %77 : vector<2x16xi1>, vector<2x16xf32>
    %79 = arith.addf %64, %71 : vector<2x16xf32>
    %80 = arith.addf %79, %78 : vector<2x16xf32>
    %81 = tpu.concatenate %56, %80 in 1 : vector<2x16xf32>, vector<2x16xf32> -> vector<2x32xf32>
    %c0_34 = arith.constant 0 : index
    %c0_35 = arith.constant 0 : index
    %82 = vector.load %arg11[%c0_34, %c0_35] : memref<2x32xf32, #tpu.memory_space<vmem>>, vector<2x32xf32>
    tpu.vector_store %arg11[%c0_34, %c0_35], %81 {strides = array<i32>} : memref<2x32xf32, #tpu.memory_space<vmem>>, vector<2x32xf32>,
    return
  }
  func.func @transform_0(%arg0: i32) -> (i32, i32) {
    %c0_i32 = arith.constant 0 : i32
    %c0_i32_0 = arith.constant 0 : i32
    return %arg0, %c0_i32 : i32, i32
  }
  func.func @transform_1(%arg0: i32) -> (i32, i32) {
    %c0_i32 = arith.constant 0 : i32
    %c0_i32_0 = arith.constant 0 : i32
    return %arg0, %c0_i32 : i32, i32
  }
  func.func @transform_2(%arg0: i32) -> (i32, i32) {
    %c0_i32 = arith.constant 0 : i32
    %c0_i32_0 = arith.constant 0 : i32
    %c0_i32_1 = arith.constant 0 : i32
    return %c0_i32, %c0_i32_0 : i32, i32
  }
  func.func @transform_3(%arg0: i32) -> (i32, i32) {
    %c0_i32 = arith.constant 0 : i32
    %c0_i32_0 = arith.constant 0 : i32
    %c0_i32_1 = arith.constant 0 : i32
    return %c0_i32, %c0_i32_0 : i32, i32
  }
  func.func @transform_4(%arg0: i32) -> (i32, i32) {
    %c0_i32 = arith.constant 0 : i32
    %c0_i32_0 = arith.constant 0 : i32
    %c0_i32_1 = arith.constant 0 : i32
    return %c0_i32, %c0_i32_0 : i32, i32
  }
  func.func @transform_5(%arg0: i32) -> (i32, i32) {
    %c0_i32 = arith.constant 0 : i32
    %c0_i32_0 = arith.constant 0 : i32
    %c0_i32_1 = arith.constant 0 : i32
    return %c0_i32, %c0_i32_0 : i32, i32
  }
  func.func @transform_6(%arg0: i32) -> (i32, i32) {
    %c0_i32 = arith.constant 0 : i32
    %c0_i32_0 = arith.constant 0 : i32
    %c0_i32_1 = arith.constant 0 : i32
    return %c0_i32, %c0_i32_0 : i32, i32
  }
  func.func @transform_7(%arg0: i32) -> (i32, i32) {
    %c0_i32 = arith.constant 0 : i32
    %c0_i32_0 = arith.constant 0 : i32
    %c0_i32_1 = arith.constant 0 : i32
    return %c0_i32, %c0_i32_0 : i32, i32
  }
  func.func @transform_8(%arg0: i32) -> (i32, i32) {
    %c0_i32 = arith.constant 0 : i32
    %c0_i32_0 = arith.constant 0 : i32
    %c0_i32_1 = arith.constant 0 : i32
    return %c0_i32, %c0_i32_0 : i32, i32
  }
  func.func @transform_9(%arg0: i32) -> (i32, i32) {
    %c0_i32 = arith.constant 0 : i32
    %c0_i32_0 = arith.constant 0 : i32
    %c0_i32_1 = arith.constant 0 : i32
    return %c0_i32, %c0_i32_0 : i32, i32
  }
  func.func @transform_10(%arg0: i32) -> (i32, i32) {
    %c0_i32 = arith.constant 0 : i32
    %c0_i32_0 = arith.constant 0 : i32
    return %arg0, %c0_i32 : i32, i32
  }
}

</mosaic_0001>

<llo_original>
// kernel: mapping_forward.1
$region0: #{mapping_forward.1}
  #allocation0 [shape = 'u32[]', space=smem, size = 0x4, offset = 0x4, fixed_abs, tag = 'smem constant byte address 0x4 - core index']
  #allocation1 [shape = 'u32[144,128]{1,0:T(1,128)}', space=vmem, size = 0x12000, scoped, tag = 'internal scratch']
  %s0 = inlined_call_operand.hbm [shape: f32[2,8], index: 0, kind: input, shape index: {}]
  %s1 = inlined_call_operand.vmem [shape: s32[2,2], index: 1, kind: input, shape index: {}]
  %s2 = inlined_call_operand.vmem [shape: bf16[8,128], index: 2, kind: input, shape index: {}]
  %s3 = inlined_call_operand.hbm [shape: bf16[128,128], index: 3, kind: input, shape index: {}]
  %s4 = inlined_call_operand.hbm [shape: bf16[128,128], index: 4, kind: input, shape index: {}]
  %s5 = inlined_call_operand.vmem [shape: f32[1,128], index: 5, kind: input, shape index: {}]
  %s6 = inlined_call_operand.vmem [shape: f32[1,128], index: 6, kind: input, shape index: {}]
  %s7 = inlined_call_operand.vmem [shape: f32[1,128], index: 7, kind: input, shape index: {}]
  %s8 = inlined_call_operand.hbm [shape: bf16[128,128], index: 8, kind: input, shape index: {}]
  %s9 = inlined_call_operand.vmem [shape: f32[1,128], index: 9, kind: input, shape index: {}]
  %s10 = inlined_call_operand.vmem [shape: f32[2,32], index: 10, kind: output, shape index: {}]
  %s11 = sld [smem:[#allocation0]]
  $region66: #{mapping_forward.1} parent=0
    _
  %s13 = ssub.s32 1, %s11
  %s14 = scalar_select 0, %s13, %s11
  $region1: #{mapping_forward.1} parent=0
    #allocation2 [shape = 'u8[1024]{0}', space=vmem, size = 0x400, scoped, tag = 'input window, operand 0, single buffered']
    #allocation3 [shape = 's32[1]{0}', space=sflag, size = 0x4, scoped, tag = 'scoped memory for mapping_forward.1']
    #allocation4 [shape = 'u8[32768]{0}', space=vmem, size = 0x8000, scoped, tag = 'input window, operand 3, single buffered']
    #allocation5 [shape = 's32[1]{0}', space=sflag, size = 0x4, scoped, tag = 'scoped memory for mapping_forward.1']
    #allocation6 [shape = 'u8[32768]{0}', space=vmem, size = 0x8000, scoped, tag = 'input window, operand 4, single buffered']
    #allocation7 [shape = 'u8[32768]{0}', space=vmem, size = 0x8000, scoped, tag = 'input window, operand 8, single buffered']
    #allocation8 [shape = 's32[1]{0}', space=sflag, size = 0x4, scoped, tag = 'scoped memory for mapping_forward.1']
    %15 = vsyncpa [#allocation3], 0
    %16 = vsyncpa [#allocation5], 0
    %17 = vsyncpa [#allocation8], 0
    // Predicated region
    $region2: #{mapping_forward.1} parent=1 // pred_check
      _
    $region3: #{mapping_forward.1} parent=1 // pred_check_branch
      %19 = sbr.rel (0) target = $region5
    $region4: #{mapping_forward.1} parent=1 // pred_region
      %s21 = ssub.s32 32, 32
      %22 = vsyncadd [#allocation3], %s21
      %s24 = sshll.u32 [#allocation2], 4
      %s25 = int_to_ptr.vmem [resolvable:$true] %s24
      %27 = dma.hbm_to_vmem [thread:$0]  %s0, 32, %s25, [#allocation3]
    $region5: #{mapping_forward.1} parent=1 // pred_fallthru
      _
    // Predicated region
    $region6: #{mapping_forward.1} parent=1 // pred_check
      _
    $region7: #{mapping_forward.1} parent=1 // pred_check_branch
      %29 = sbr.rel (0) target = $region9
    $region8: #{mapping_forward.1} parent=1 // pred_region
      _
    $region9: #{mapping_forward.1} parent=1 // pred_fallthru
      _
    // Predicated region
    $region10: #{mapping_forward.1} parent=1 // pred_check
      _
    $region11: #{mapping_forward.1} parent=1 // pred_check_branch
      %31 = sbr.rel (0) target = $region13
    $region12: #{mapping_forward.1} parent=1 // pred_region
      _
    $region13: #{mapping_forward.1} parent=1 // pred_fallthru
      _
    // Predicated region
    $region14: #{mapping_forward.1} parent=1 // pred_check
      _
    $region15: #{mapping_forward.1} parent=1 // pred_check_branch
      %33 = sbr.rel (0) target = $region17
    $region16: #{mapping_forward.1} parent=1 // pred_region
      %s35 = ssub.s32 1024, 1024
      %36 = vsyncadd [#allocation5], %s35
      %s37 = sshll.u32 [#allocation4], 4
      %s38 = int_to_ptr.vmem [resolvable:$true] %s37
      %43 = dma.hbm_to_vmem [thread:$0]  %s3, 1024, %s38, [#allocation5], 64, 64, 4
    $region17: #{mapping_forward.1} parent=1 // pred_fallthru
      _
    // Predicated region
    $region18: #{mapping_forward.1} parent=1 // pred_check
      _
    $region19: #{mapping_forward.1} parent=1 // pred_check_branch
      %45 = sbr.rel (0) target = $region21
    $region20: #{mapping_forward.1} parent=1 // pred_region
      %s47 = ssub.s32 1024, 1024
      %48 = vsyncadd [#allocation5], %s47
      %s49 = sshll.u32 [#allocation6], 4
      %s50 = int_to_ptr.vmem [resolvable:$true] %s49
      %55 = dma.hbm_to_vmem [thread:$0]  %s4, 1024, %s50, [#allocation5], 64, 64, 4
    $region21: #{mapping_forward.1} parent=1 // pred_fallthru
      _
    // Predicated region
    $region22: #{mapping_forward.1} parent=1 // pred_check
      _
    $region23: #{mapping_forward.1} parent=1 // pred_check_branch
      %57 = sbr.rel (0) target = $region25
    $region24: #{mapping_forward.1} parent=1 // pred_region
      _
    $region25: #{mapping_forward.1} parent=1 // pred_fallthru
      _
    // Predicated region
    $region26: #{mapping_forward.1} parent=1 // pred_check
      _
    $region27: #{mapping_forward.1} parent=1 // pred_check_branch
      %59 = sbr.rel (0) target = $region29
    $region28: #{mapping_forward.1} parent=1 // pred_region
      _
    $region29: #{mapping_forward.1} parent=1 // pred_fallthru
      _
    // Predicated region
    $region30: #{mapping_forward.1} parent=1 // pred_check
      _
    $region31: #{mapping_forward.1} parent=1 // pred_check_branch
      %61 = sbr.rel (0) target = $region33
    $region32: #{mapping_forward.1} parent=1 // pred_region
      _
    $region33: #{mapping_forward.1} parent=1 // pred_fallthru
      _
    // Predicated region
    $region34: #{mapping_forward.1} parent=1 // pred_check
      _
    $region35: #{mapping_forward.1} parent=1 // pred_check_branch
      %63 = sbr.rel (0) target = $region37
    $region36: #{mapping_forward.1} parent=1 // pred_region
      %s65 = ssub.s32 1024, 1024
      %66 = vsyncadd [#allocation8], %s65
      %s67 = sshll.u32 [#allocation7], 4
      %s68 = int_to_ptr.vmem [resolvable:$true] %s67
      %73 = dma.hbm_to_vmem [thread:$0]  %s8, 1024, %s68, [#allocation8], 64, 64, 4
    $region37: #{mapping_forward.1} parent=1 // pred_fallthru
      _
    // Predicated region
    $region38: #{mapping_forward.1} parent=1 // pred_check
      _
    $region39: #{mapping_forward.1} parent=1 // pred_check_branch
      %75 = sbr.rel (0) target = $region41
    $region40: #{mapping_forward.1} parent=1 // pred_region
      _
    $region41: #{mapping_forward.1} parent=1 // pred_fallthru
      _
    // Predicated region
    $region42: #{mapping_forward.1} parent=1 // pred_check
      _
    $region43: #{mapping_forward.1} parent=1 // pred_check_branch
      %77 = sbr.rel (0) target = $region45
    $region44: #{mapping_forward.1} parent=1 // pred_region
      %78 = dma.done [#allocation3], 32
    $region45: #{mapping_forward.1} parent=1 // pred_fallthru
      _
    // Predicated region
    $region46: #{mapping_forward.1} parent=1 // pred_check
      _
    $region47: #{mapping_forward.1} parent=1 // pred_check_branch
      %80 = sbr.rel (0) target = $region49
    $region48: #{mapping_forward.1} parent=1 // pred_region
      %81 = dma.done [#allocation5], 1024
    $region49: #{mapping_forward.1} parent=1 // pred_fallthru
      _
    // Predicated region
    $region50: #{mapping_forward.1} parent=1 // pred_check
      _
    $region51: #{mapping_forward.1} parent=1 // pred_check_branch
      %83 = sbr.rel (0) target = $region53
    $region52: #{mapping_forward.1} parent=1 // pred_region
      %84 = dma.done [#allocation5], 1024
    $region53: #{mapping_forward.1} parent=1 // pred_fallthru
      _
    // Predicated region
    $region54: #{mapping_forward.1} parent=1 // pred_check
      _
    $region55: #{mapping_forward.1} parent=1 // pred_check_branch
      %86 = sbr.rel (0) target = $region57
    $region56: #{mapping_forward.1} parent=1 // pred_region
      %87 = dma.done [#allocation8], 1024
    $region57: #{mapping_forward.1} parent=1 // pred_fallthru
      _
    %v89 = vld [vmem:[#allocation2] sm:$0x3]
    %v90 = vpack.c.bf16 %v89, %v89
    %v91 = vld [vmem:[%s2] sm:$0xf]
    %v92 = vld [vmem:[%s5] sm:$0x1]
    %v94 = vlaneseq
    %v95 = vshrl.u32 %v94, 7
    %v96 = vsub.s32 0, %v95
    %v97 = vrot.slane %v92, %v96
    %vm99 = vcmask 64512
    %v101 = vsel %vm99, %v90, 0
    %vm103 = vcmask 1043456
    %v105 = vsel %vm103, %v91, 0
    %107 = vmatprep.subr.bf16.mxu0 0
    %108 = vmatpush1.bf16.msra.mxu0 %v105
    %109 = vmatprep.subr.bf16.mxu0 0
    %110 = vmatpush1.bf16.msra.mxu0 0
    %111 = vmatprep.subr.bf16.mxu0 0
    %112 = vmatpush1.bf16.msra.mxu0 0
    %113 = vmatprep.subr.bf16.mxu0 0
    %114 = vmatpush1.bf16.msra.mxu0 0
    %115 = vmatprep.subr.bf16.mxu0 0
    %116 = vmatpush1.bf16.msra.mxu0 0
    %117 = vmatprep.subr.bf16.mxu0 0
    %118 = vmatpush1.bf16.msra.mxu0 0
    %119 = vmatprep.subr.bf16.mxu0 0
    %120 = vmatpush1.bf16.msra.mxu0 0
    %121 = vmatprep.subr.bf16.mxu0 0
    %122 = vmatpush1.bf16.msra.mxu0 0
    %123 = vmatprep.subr.bf16.mxu0 0
    %124 = vmatpush1.bf16.msra.mxu0 0
    %125 = vmatprep.subr.bf16.mxu0 0
    %126 = vmatpush1.bf16.msra.mxu0 0
    %127 = vmatprep.subr.bf16.mxu0 0
    %128 = vmatpush1.bf16.msra.mxu0 0
    %129 = vmatprep.subr.bf16.mxu0 0
    %130 = vmatpush1.bf16.msra.mxu0 0
    %131 = vmatprep.subr.bf16.mxu0 0
    %132 = vmatpush1.bf16.msra.mxu0 0
    %133 = vmatprep.subr.bf16.mxu0 0
    %134 = vmatpush1.bf16.msra.mxu0 0
    %135 = vmatprep.subr.bf16.mxu0 0
    %136 = vmatpush1.bf16.msra.mxu0 0
    %137 = vmatprep.subr.bf16.mxu0 0
    %138 = vmatpush1.bf16.msra.mxu0 0
    %139 = vmatprep.mubr.bf16.mxu0 0
    %140 = vmatmul.mubr.bf16.gmra.mrb[0].mxu0 %v101
    %v141 = vpop.f32.mrb[0].mxu0
    %v142 = vadd.f32 %v97, %v141
    %v143 = vpop.f32.mrb[0].mxu0
    %v144 = vpop.f32.mrb[0].mxu0
    %v145 = vpop.f32.mrb[0].mxu0
    %146 = vdwg.mxu0
    %v147 = vmax.f32 %v142, 0.0
    %v148 = vpack.c.bf16 %v147, %v147
    %v149 = vld [vmem:[#allocation4] sm:$0xf]
    %v150 = vld [vmem:[#allocation4 + $0x4] sm:$0xf]
    %v151 = vld [vmem:[#allocation4 + $0x8] sm:$0xf]
    %v152 = vld [vmem:[#allocation4 + $0xc] sm:$0xf]
    %v153 = vld [vmem:[#allocation4 + $0x10] sm:$0xf]
    %v154 = vld [vmem:[#allocation4 + $0x14] sm:$0xf]
    %v155 = vld [vmem:[#allocation4 + $0x18] sm:$0xf]
    %v156 = vld [vmem:[#allocation4 + $0x1c] sm:$0xf]
    %v157 = vld [vmem:[#allocation4 + $0x20] sm:$0xf]
    %v158 = vld [vmem:[#allocation4 + $0x24] sm:$0xf]
    %v159 = vld [vmem:[#allocation4 + $0x28] sm:$0xf]
    %v160 = vld [vmem:[#allocation4 + $0x2c] sm:$0xf]
    %v161 = vld [vmem:[#allocation4 + $0x30] sm:$0xf]
    %v162 = vld [vmem:[#allocation4 + $0x34] sm:$0xf]
    %v163 = vld [vmem:[#allocation4 + $0x38] sm:$0xf]
    %v164 = vld [vmem:[#allocation4 + $0x3c] sm:$0xf]
    %v165 = vld [vmem:[%s6] sm:$0x1]
    %v167 = vlaneseq
    %v168 = vshrl.u32 %v167, 7
    %v169 = vsub.s32 0, %v168
    %v170 = vrot.slane %v165, %v169
    %v188 = vunpack.c.l.b16 %v149
    %v189 = vunpack.c.l.b16 %v150
    %v190 = vunpack.c.l.b16 %v151
    %v191 = vunpack.c.l.b16 %v152
    %v192 = vunpack.c.l.b16 %v153
    %v193 = vunpack.c.l.b16 %v154
    %v194 = vunpack.c.l.b16 %v155
    %v195 = vunpack.c.l.b16 %v156
    %v196 = vunpack.c.l.b16 %v157
    %v197 = vunpack.c.l.b16 %v158
    %v198 = vunpack.c.l.b16 %v159
    %v199 = vunpack.c.l.b16 %v160
    %v200 = vunpack.c.l.b16 %v161
    %v201 = vunpack.c.l.b16 %v162
    %v202 = vunpack.c.l.b16 %v163
    %v203 = vunpack.c.l.b16 %v164
    %v204 = vpack.c.b16 %v189, %v188
    %v205 = vpack.c.b16 %v191, %v190
    %v206 = vpack.c.b16 %v193, %v192
    %v207 = vpack.c.b16 %v195, %v194
    %v208 = vpack.c.b16 %v197, %v196
    %v209 = vpack.c.b16 %v199, %v198
    %v210 = vpack.c.b16 %v201, %v200
    %v211 = vpack.c.b16 %v203, %v202
    %220 = vmatprep.subr.bf16.mxu0 0
    %221 = vmatpush1.bf16.msra.mxu0 %v204
    %222 = vmatprep.subr.bf16.mxu0 0
    %223 = vmatpush1.bf16.msra.mxu0 %v205
    %224 = vmatprep.subr.bf16.mxu0 0
    %225 = vmatpush1.bf16.msra.mxu0 %v206
    %226 = vmatprep.subr.bf16.mxu0 0
    %227 = vmatpush1.bf16.msra.mxu0 %v207
    %228 = vmatprep.subr.bf16.mxu0 0
    %229 = vmatpush1.bf16.msra.mxu0 %v208
    %230 = vmatprep.subr.bf16.mxu0 0
    %231 = vmatpush1.bf16.msra.mxu0 %v209
    %232 = vmatprep.subr.bf16.mxu0 0
    %233 = vmatpush1.bf16.msra.mxu0 %v210
    %234 = vmatprep.subr.bf16.mxu0 0
    %235 = vmatpush1.bf16.msra.mxu0 %v211
    %236 = vmatprep.subr.bf16.mxu0 0
    %237 = vmatpush1.bf16.msra.mxu0 0
    %238 = vmatprep.subr.bf16.mxu0 0
    %239 = vmatpush1.bf16.msra.mxu0 0
    %240 = vmatprep.subr.bf16.mxu0 0
    %241 = vmatpush1.bf16.msra.mxu0 0
    %242 = vmatprep.subr.bf16.mxu0 0
    %243 = vmatpush1.bf16.msra.mxu0 0
    %244 = vmatprep.subr.bf16.mxu0 0
    %245 = vmatpush1.bf16.msra.mxu0 0
    %246 = vmatprep.subr.bf16.mxu0 0
    %247 = vmatpush1.bf16.msra.mxu0 0
    %248 = vmatprep.subr.bf16.mxu0 0
    %249 = vmatpush1.bf16.msra.mxu0 0
    %250 = vmatprep.subr.bf16.mxu0 0
    %251 = vmatpush1.bf16.msra.mxu0 0
    %252 = vmatprep.mubr.bf16.mxu0 0
    %253 = vmatmul.mubr.bf16.gmra.mrb[0].mxu0 %v148
    %v254 = vpop.f32.mrb[0].mxu0
    %v255 = vadd.f32 %v170, %v254
    %v256 = vpop.f32.mrb[0].mxu0
    %v257 = vpop.f32.mrb[0].mxu0
    %v258 = vpop.f32.mrb[0].mxu0
    %259 = vdwg.mxu0
    %v260 = vmax.f32 %v255, 0.0
    %v261 = vpack.c.bf16 %v260, %v260
    %v262 = vld [vmem:[#allocation6] sm:$0xf]
    %v263 = vld [vmem:[#allocation6 + $0x4] sm:$0xf]
    %v264 = vld [vmem:[#allocation6 + $0x8] sm:$0xf]
    %v265 = vld [vmem:[#allocation6 + $0xc] sm:$0xf]
    %v266 = vld [vmem:[#allocation6 + $0x10] sm:$0xf]
    %v267 = vld [vmem:[#allocation6 + $0x14] sm:$0xf]
    %v268 = vld [vmem:[#allocation6 + $0x18] sm:$0xf]
    %v269 = vld [vmem:[#allocation6 + $0x1c] sm:$0xf]
    %v270 = vld [vmem:[#allocation6 + $0x20] sm:$0xf]
    %v271 = vld [vmem:[#allocation6 + $0x24] sm:$0xf]
    %v272 = vld [vmem:[#allocation6 + $0x28] sm:$0xf]
    %v273 = vld [vmem:[#allocation6 + $0x2c] sm:$0xf]
    %v274 = vld [vmem:[#allocation6 + $0x30] sm:$0xf]
    %v275 = vld [vmem:[#allocation6 + $0x34] sm:$0xf]
    %v276 = vld [vmem:[#allocation6 + $0x38] sm:$0xf]
    %v277 = vld [vmem:[#allocation6 + $0x3c] sm:$0xf]
    %v278 = vld [vmem:[%s7] sm:$0x1]
    %v280 = vlaneseq
    %v281 = vshrl.u32 %v280, 7
    %v282 = vsub.s32 0, %v281
    %v283 = vrot.slane %v278, %v282
    %v301 = vunpack.c.l.b16 %v262
    %v302 = vunpack.c.l.b16 %v263
    %v303 = vunpack.c.l.b16 %v264
    %v304 = vunpack.c.l.b16 %v265
    %v305 = vunpack.c.l.b16 %v266
    %v306 = vunpack.c.l.b16 %v267
    %v307 = vunpack.c.l.b16 %v268
    %v308 = vunpack.c.l.b16 %v269
    %v309 = vunpack.c.l.b16 %v270
    %v310 = vunpack.c.l.b16 %v271
    %v311 = vunpack.c.l.b16 %v272
    %v312 = vunpack.c.l.b16 %v273
    %v313 = vunpack.c.l.b16 %v274
    %v314 = vunpack.c.l.b16 %v275
    %v315 = vunpack.c.l.b16 %v276
    %v316 = vunpack.c.l.b16 %v277
    %v317 = vpack.c.b16 %v302, %v301
    %v318 = vpack.c.b16 %v304, %v303
    %v319 = vpack.c.b16 %v306, %v305
    %v320 = vpack.c.b16 %v308, %v307
    %v321 = vpack.c.b16 %v310, %v309
    %v322 = vpack.c.b16 %v312, %v311
    %v323 = vpack.c.b16 %v314, %v313
    %v324 = vpack.c.b16 %v316, %v315
    %333 = vmatprep.subr.bf16.mxu0 0
    %334 = vmatpush1.bf16.msra.mxu0 %v317
    %335 = vmatprep.subr.bf16.mxu0 0
    %336 = vmatpush1.bf16.msra.mxu0 %v318
    %337 = vmatprep.subr.bf16.mxu0 0
    %338 = vmatpush1.bf16.msra.mxu0 %v319
    %339 = vmatprep.subr.bf16.mxu0 0
    %340 = vmatpush1.bf16.msra.mxu0 %v320
    %341 = vmatprep.subr.bf16.mxu0 0
    %342 = vmatpush1.bf16.msra.mxu0 %v321
    %343 = vmatprep.subr.bf16.mxu0 0
    %344 = vmatpush1.bf16.msra.mxu0 %v322
    %345 = vmatprep.subr.bf16.mxu0 0
    %346 = vmatpush1.bf16.msra.mxu0 %v323
    %347 = vmatprep.subr.bf16.mxu0 0
    %348 = vmatpush1.bf16.msra.mxu0 %v324
    %349 = vmatprep.subr.bf16.mxu0 0
    %350 = vmatpush1.bf16.msra.mxu0 0
    %351 = vmatprep.subr.bf16.mxu0 0
    %352 = vmatpush1.bf16.msra.mxu0 0
    %353 = vmatprep.subr.bf16.mxu0 0
    %354 = vmatpush1.bf16.msra.mxu0 0
    %355 = vmatprep.subr.bf16.mxu0 0
    %356 = vmatpush1.bf16.msra.mxu0 0
    %357 = vmatprep.subr.bf16.mxu0 0
    %358 = vmatpush1.bf16.msra.mxu0 0
    %359 = vmatprep.subr.bf16.mxu0 0
    %360 = vmatpush1.bf16.msra.mxu0 0
    %361 = vmatprep.subr.bf16.mxu0 0
    %362 = vmatpush1.bf16.msra.mxu0 0
    %363 = vmatprep.subr.bf16.mxu0 0
    %364 = vmatpush1.bf16.msra.mxu0 0
    %365 = vmatprep.mubr.bf16.mxu0 0
    %366 = vmatmul.mubr.bf16.gmra.mrb[0].mxu0 %v261
    %v367 = vpop.f32.mrb[0].mxu0
    %v368 = vadd.f32 %v283, %v367
    %v369 = vpop.f32.mrb[0].mxu0
    %v370 = vpop.f32.mrb[0].mxu0
    %v371 = vpop.f32.mrb[0].mxu0
    %372 = vdwg.mxu0
    %v373 = vmax.f32 %v368, 0.0
    %v374 = vpack.c.bf16 %v373, %v373
    %v375 = vld [vmem:[#allocation7] sm:$0xf]
    %v376 = vld [vmem:[#allocation7 + $0x4] sm:$0xf]
    %v377 = vld [vmem:[#allocation7 + $0x8] sm:$0xf]
    %v378 = vld [vmem:[#allocation7 + $0xc] sm:$0xf]
    %v379 = vld [vmem:[#allocation7 + $0x10] sm:$0xf]
    %v380 = vld [vmem:[#allocation7 + $0x14] sm:$0xf]
    %v381 = vld [vmem:[#allocation7 + $0x18] sm:$0xf]
    %v382 = vld [vmem:[#allocation7 + $0x1c] sm:$0xf]
    %v383 = vld [vmem:[#allocation7 + $0x20] sm:$0xf]
    %v384 = vld [vmem:[#allocation7 + $0x24] sm:$0xf]
    %v385 = vld [vmem:[#allocation7 + $0x28] sm:$0xf]
    %v386 = vld [vmem:[#allocation7 + $0x2c] sm:$0xf]
    %v387 = vld [vmem:[#allocation7 + $0x30] sm:$0xf]
    %v388 = vld [vmem:[#allocation7 + $0x34] sm:$0xf]
    %v389 = vld [vmem:[#allocation7 + $0x38] sm:$0xf]
    %v390 = vld [vmem:[#allocation7 + $0x3c] sm:$0xf]
    %v391 = vld [vmem:[%s9] sm:$0x1]
    %v393 = vlaneseq
    %v394 = vshrl.u32 %v393, 7
    %v395 = vsub.s32 0, %v394
    %v396 = vrot.slane %v391, %v395
    %v414 = vunpack.c.l.b16 %v375
    %v415 = vunpack.c.l.b16 %v376
    %v416 = vunpack.c.l.b16 %v377
    %v417 = vunpack.c.l.b16 %v378
    %v418 = vunpack.c.l.b16 %v379
    %v419 = vunpack.c.l.b16 %v380
    %v420 = vunpack.c.l.b16 %v381
    %v421 = vunpack.c.l.b16 %v382
    %v422 = vunpack.c.l.b16 %v383
    %v423 = vunpack.c.l.b16 %v384
    %v424 = vunpack.c.l.b16 %v385
    %v425 = vunpack.c.l.b16 %v386
    %v426 = vunpack.c.l.b16 %v387
    %v427 = vunpack.c.l.b16 %v388
    %v428 = vunpack.c.l.b16 %v389
    %v429 = vunpack.c.l.b16 %v390
    %v430 = vpack.c.b16 %v415, %v414
    %v431 = vpack.c.b16 %v417, %v416
    %v432 = vpack.c.b16 %v419, %v418
    %v433 = vpack.c.b16 %v421, %v420
    %v434 = vpack.c.b16 %v423, %v422
    %v435 = vpack.c.b16 %v425, %v424
    %v436 = vpack.c.b16 %v427, %v426
    %v437 = vpack.c.b16 %v429, %v428
    %446 = vmatprep.subr.bf16.mxu0 0
    %447 = vmatpush1.bf16.msra.mxu0 %v430
    %448 = vmatprep.subr.bf16.mxu0 0
    %449 = vmatpush1.bf16.msra.mxu0 %v431
    %450 = vmatprep.subr.bf16.mxu0 0
    %451 = vmatpush1.bf16.msra.mxu0 %v432
    %452 = vmatprep.subr.bf16.mxu0 0
    %453 = vmatpush1.bf16.msra.mxu0 %v433
    %454 = vmatprep.subr.bf16.mxu0 0
    %455 = vmatpush1.bf16.msra.mxu0 %v434
    %456 = vmatprep.subr.bf16.mxu0 0
    %457 = vmatpush1.bf16.msra.mxu0 %v435
    %458 = vmatprep.subr.bf16.mxu0 0
    %459 = vmatpush1.bf16.msra.mxu0 %v436
    %460 = vmatprep.subr.bf16.mxu0 0
    %461 = vmatpush1.bf16.msra.mxu0 %v437
    %462 = vmatprep.subr.bf16.mxu0 0
    %463 = vmatpush1.bf16.msra.mxu0 0
    %464 = vmatprep.subr.bf16.mxu0 0
    %465 = vmatpush1.bf16.msra.mxu0 0
    %466 = vmatprep.subr.bf16.mxu0 0
    %467 = vmatpush1.bf16.msra.mxu0 0
    %468 = vmatprep.subr.bf16.mxu0 0
    %469 = vmatpush1.bf16.msra.mxu0 0
    %470 = vmatprep.subr.bf16.mxu0 0
    %471 = vmatpush1.bf16.msra.mxu0 0
    %472 = vmatprep.subr.bf16.mxu0 0
    %473 = vmatpush1.bf16.msra.mxu0 0
    %474 = vmatprep.subr.bf16.mxu0 0
    %475 = vmatpush1.bf16.msra.mxu0 0
    %476 = vmatprep.subr.bf16.mxu0 0
    %477 = vmatpush1.bf16.msra.mxu0 0
    %478 = vmatprep.mubr.bf16.mxu0 0
    %479 = vmatmul.mubr.bf16.gmra.mrb[0].mxu0 %v374
    %v480 = vpop.f32.mrb[0].mxu0
    %v481 = vadd.f32 %v396, %v480
    %v482 = vpop.f32.mrb[0].mxu0
    %v483 = vpop.f32.mrb[0].mxu0
    %v484 = vpop.f32.mrb[0].mxu0
    %485 = vdwg.mxu0
    %v486 = vld [vmem:[%s1] sm:$0x3]
    %vm487 = vcmp.eq.s32.totalorder %v486, 0
    %v488 = vsel %vm487, 1, 0
    %489 = vset.pattern.permute.xlu0 0
    %490 = vperm.xlu0 %489, %v488
    %v491 = vpop.permute.xlu0 %490
    %vm492 = vcmp.eq.s32.totalorder %v491, 1
    %v493 = vsel %vm492, %v481, 0.0
    %vm494 = vcmp.eq.s32.totalorder %v486, 1
    %v495 = vsel %vm494, 1, 0
    %496 = vset.pattern.permute.xlu0 0
    %497 = vperm.xlu0 %496, %v495
    %v498 = vpop.permute.xlu0 %497
    %vm499 = vcmp.eq.s32.totalorder %v498, 1
    %v500 = vsel %vm499, %v481, 0.0
    %vm501 = vcmp.eq.s32.totalorder %v486, 2
    %v502 = vsel %vm501, 1, 0
    %503 = vset.pattern.permute.xlu0 0
    %504 = vperm.xlu0 %503, %v502
    %v505 = vpop.permute.xlu0 %504
    %vm506 = vcmp.eq.s32.totalorder %v505, 1
    %v507 = vsel %vm506, %v481, 0.0
    %509 = vrot.lane.b32.xlu0 %v500, 112
    %v510 = vpop.permute.xlu0 %509
    %v512 = vadd.f32 %v493, %v510
    %514 = vrot.lane.b32.xlu0 %v507, 96
    %v515 = vpop.permute.xlu0 %514
    %v517 = vadd.f32 %v512, %v515
    %518 = vset.pattern.permute.xlu0 1
    %519 = vperm.xlu0 %518, %v488
    %v520 = vpop.permute.xlu0 %519
    %vm521 = vcmp.eq.s32.totalorder %v520, 1
    %v522 = vsel %vm521, %v481, 0.0
    %523 = vset.pattern.permute.xlu0 1
    %524 = vperm.xlu0 %523, %v495
    %v525 = vpop.permute.xlu0 %524
    %vm526 = vcmp.eq.s32.totalorder %v525, 1
    %v527 = vsel %vm526, %v481, 0.0
    %528 = vset.pattern.permute.xlu0 1
    %529 = vperm.xlu0 %528, %v502
    %v530 = vpop.permute.xlu0 %529
    %vm531 = vcmp.eq.s32.totalorder %v530, 1
    %v532 = vsel %vm531, %v481, 0.0
    %534 = vrot.lane.b32.xlu0 %v527, 112
    %v535 = vpop.permute.xlu0 %534
    %v537 = vadd.f32 %v522, %v535
    %539 = vrot.lane.b32.xlu0 %v532, 96
    %v540 = vpop.permute.xlu0 %539
    %v542 = vadd.f32 %v537, %v540
    %544 = vrot.lane.b32.xlu0 %v542, 16
    %v545 = vpop.permute.xlu0 %544
    %vm547 = vcmask 130048
    %v548 = vsel %vm547, %v517, %v545
    %vm549 = vcmask 254976
    %550 = vst.msk [vmem:[%s10] sm:$0x3] %vm549, %v548
    // Predicated region
    $region58: #{mapping_forward.1} parent=1 // pred_check
      _
    $region59: #{mapping_forward.1} parent=1 // pred_check_branch
      %552 = sbr.rel (0) target = $region61
    $region60: #{mapping_forward.1} parent=1 // pred_region
      _
    $region61: #{mapping_forward.1} parent=1 // pred_fallthru
      _
    // Predicated region
    $region62: #{mapping_forward.1} parent=1 // pred_check
      _
    $region63: #{mapping_forward.1} parent=1 // pred_check_branch
      %554 = sbr.rel (0) target = $region65
    $region64: #{mapping_forward.1} parent=1 // pred_region
      _
    $region65: #{mapping_forward.1} parent=1 // pred_fallthru
      _
    %555 = vsyncpa [#allocation3], 1
    %556 = vsyncpa [#allocation5], 1
    %557 = vsyncpa [#allocation8], 1

</llo_original>
